<compile_context>
chip_gen: v6e
topology: v6e:2x2x1
jax: 0.10.0
libtpu: 0.0.40
codegen_flags: <defaults>
</compile_context>

<pallas_src>
import functools

import jax
import jax.numpy as jnp
import numpy as np
from jax.experimental import pallas as pl
from jax.experimental.pallas import tpu as pltpu

CHANNEL = 3


def _l_color_kernel(x_ref, out_ref, sum_ref, *, inv_hw, rem):
    # x_ref   : (bpg, C, F, tile)  one lane-dense spatial tile of one batch group
    # out_ref : (1, bpg, 1, 1)     per-batch k for this group (written on last tile)
    # sum_ref : (bpg, C, F, 1)     running f32 per-(batch, channel, fold) sums
    t = pl.program_id(1)
    last = pl.num_programs(1) - 1

    @pl.when(t == 0)
    def _init():
        sum_ref[...] = jnp.zeros_like(sum_ref)

    xf = x_ref[...].astype(jnp.float32)

    if rem == 0:
        # spatial tiles divide evenly: plain lane reduction every step
        sum_ref[...] += jnp.sum(xf, axis=-1, keepdims=True)
    else:
        @pl.when(t < last)
        def _full_tile():
            sum_ref[...] += jnp.sum(xf, axis=-1, keepdims=True)

        @pl.when(t == last)
        def _ragged_tile():
            # mask out-of-range lanes of the last (partial) tile before summing
            lane = jax.lax.broadcasted_iota(jnp.int32, xf.shape, xf.ndim - 1)
            xm = jnp.where(lane < rem, xf, 0.0)
            sum_ref[...] += jnp.sum(xm, axis=-1, keepdims=True)

    @pl.when(t == last)
    def _finalize():
        sums = sum_ref[...]                       # (bpg, C, F, 1)
        tot = sums[:, :, 0:1, :]
        for f in range(1, sums.shape[2]):         # static unroll, F <= 8
            tot = tot + sums[:, :, f:f + 1, :]    # (bpg, C, 1, 1)
        means = tot * inv_hw                      # per-channel means
        mr = means[:, 0]                          # (bpg, 1, 1)
        mg = means[:, 1]
        mb = means[:, 2]
        drg = (mr - mg) * (mr - mg)               # Drg = (mr-mg)^2 etc.
        drb = (mr - mb) * (mr - mb)
        dgb = (mb - mg) * (mb - mg)
        # k = sqrt(Drg^2 + Drb^2 + Dgb^2)
        out_ref[0] = jnp.sqrt(drg * drg + drb * drb + dgb * dgb)


def l_color(x):
    """Pallas TPU forward pass of L_color.  x: (B, 3, H, W) -> (B, 1, 1, 1)."""
    B, C, H, W = x.shape
    assert C == CHANNEL, "L_color expects 3 (RGB) channels"
    HW = H * W

    if not jnp.issubdtype(x.dtype, jnp.floating):
        x = x.astype(jnp.float32)
    dsize = jnp.dtype(x.dtype).itemsize

    # ---- sublane fold: (B, C, HW) -> (B, C, F, Q), a free reshape -----------
    if HW % 8 == 0:
        fold = 8
    elif HW % 4 == 0:
        fold = 4
    elif HW % 2 == 0:
        fold = 2
    else:
        fold = 1
    q = HW // fold
    x = x.reshape(B, C, fold, q)

    # ---- batch groups: gives v7x's two TensorCores a parallel axis ----------
    groups = 2 if (B >= 2 and B % 2 == 0) else 1
    bpg = B // groups

    # ---- generation/batch-aware lane-tile sizing -----------------------------
    try:
        vmem_cap = int(pltpu.get_tpu_info().vmem_capacity_bytes)
    except Exception:
        vmem_cap = 64 * 1024 * 1024                    # conservative (v7x per-TC)
    input_budget = vmem_cap // 2                       # double-buffered input window
    fold_pad = ((fold + 7) // 8) * 8                   # sublane padding in VMEM
    bytes_per_lane = bpg * CHANNEL * fold_pad * dsize
    tile = (input_budget // (2 * bytes_per_lane)) // 128 * 128
    q_pad = ((q + 127) // 128) * 128
    tile = max(128, min(tile, q_pad))
    n_tiles = pl.cdiv(q, tile)
    rem = q - (n_tiles - 1) * tile
    if rem == tile:                                    # evenly divides -> no masking
        rem = 0

    kernel = functools.partial(_l_color_kernel, inv_hw=1.0 / float(HW), rem=rem)

    cost = pl.CostEstimate(
        flops=B * CHANNEL * HW,
        transcendentals=B,
        bytes_accessed=B * CHANNEL * HW * dsize + B * 4,
    )

    k = pl.pallas_call(
        kernel,
        out_shape=jax.ShapeDtypeStruct((groups, bpg, 1, 1), jnp.float32),
        grid_spec=pltpu.PrefetchScalarGridSpec(
            num_scalar_prefetch=0,
            grid=(groups, n_tiles),
            in_specs=[pl.BlockSpec((bpg, CHANNEL, fold, tile),
                                   lambda g, t: (g, 0, 0, t))],
            out_specs=pl.BlockSpec((1, bpg, 1, 1), lambda g, t: (g, 0, 0, 0)),
            scratch_shapes=[pltpu.VMEM((bpg, CHANNEL, fold, 1), jnp.float32)],
        ),
        compiler_params=pltpu.CompilerParams(
            dimension_semantics=("parallel", "arbitrary"),
            vmem_limit_bytes=int(vmem_cap * 0.9),
        ),
        cost_estimate=cost,
    )(x)

    return k.reshape(B, 1, 1, 1)


def _l_color_ref(x):
    # pure-JAX reference of the PyTorch forward
    mean_rgb = jnp.mean(x.astype(jnp.float32), axis=(2, 3), keepdims=True)
    mr, mg, mb = mean_rgb[:, 0:1], mean_rgb[:, 1:2], mean_rgb[:, 2:3]
    drg = (mr - mg) ** 2
    drb = (mr - mb) ** 2
    dgb = (mb - mg) ** 2
    return jnp.sqrt(drg ** 2 + drb ** 2 + dgb ** 2)


if __name__ == "__main__":
    key = jax.random.PRNGKey(0)
    B, C, H, W = 2, 3, 16, 16
    x = jax.random.uniform(key, (B, C, H, W), dtype=jnp.float32)

    k = jax.jit(l_color)(x)
    jax.block_until_ready(k)

    ref = _l_color_ref(x)
    np.testing.assert_allclose(np.asarray(k), np.asarray(ref),
                               rtol=1e-5, atol=1e-6)
    print("KERNEL_OK")
</pallas_src>

<mosaic_0001>
module attributes {stable_mosaic.version = 11 : i64} {
  func.func @_l_color_kernel(%arg0: i32, %arg1: i32, %arg2: memref<1x3x8x128xf32, #tpu.memory_space<vmem>>, %arg3: memref<1x1x1x1xf32, #tpu.memory_space<vmem>>, %arg4: memref<1x3x8x1xf32, #tpu.memory_space<vmem>>) attributes {dimension_semantics = [#tpu.dimension_semantics<parallel>, #tpu.dimension_semantics<arbitrary>], iteration_bounds = array<i64: 2, 1>, scalar_prefetch = 0 : i64, scratch_operands = 1 : i64, tpu.core_type = #tpu.core_type<tc>, window_params = [{transform_indices = @transform_0, window_bounds = array<i64: 1, 3, 8, 128>}, {transform_indices = @transform_1, window_bounds = array<i64: 1, 1, 1, 1>}]} {
    %c0_i32 = arith.constant 0 : i32
    %0 = arith.cmpi eq, %arg1, %c0_i32 : i32
    %1 = arith.extui %0 : i1 to i32
    %c0_i32_0 = arith.constant 0 : i32
    %2 = arith.cmpi ne, %1, %c0_i32_0 : i32
    scf.if %2 {
      %cst = arith.constant 0.000000e+00 : f32
      %13 = vector.broadcast %cst : f32 to vector<1x3x8x1xf32>
      %c0_10 = arith.constant 0 : index
      %c0_11 = arith.constant 0 : index
      %c0_12 = arith.constant 0 : index
      %c0_13 = arith.constant 0 : index
      %14 = vector.load %arg4[%c0_10, %c0_11, %c0_12, %c0_13] : memref<1x3x8x1xf32, #tpu.memory_space<vmem>>, vector<1x3x8x1xf32>
      tpu.vector_store %arg4[%c0_10, %c0_11, %c0_12, %c0_13], %13 {strides = array<i32>} : memref<1x3x8x1xf32, #tpu.memory_space<vmem>>, vector<1x3x8x1xf32>,
    } else {
    }
    %c0 = arith.constant 0 : index
    %c0_1 = arith.constant 0 : index
    %c0_2 = arith.constant 0 : index
    %c0_3 = arith.constant 0 : index
    %3 = vector.load %arg2[%c0, %c0_1, %c0_2, %c0_3] : memref<1x3x8x128xf32, #tpu.memory_space<vmem>>, vector<1x3x8x128xf32>
    %c0_i32_4 = arith.constant 0 : i32
    %4 = arith.cmpi slt, %arg1, %c0_i32_4 : i32
    %5 = arith.extui %4 : i1 to i32
    %c0_i32_5 = arith.constant 0 : i32
    %6 = arith.cmpi ne, %5, %c0_i32_5 : i32
    scf.if %6 {
      %c0_10 = arith.constant 0 : index
      %c0_11 = arith.constant 0 : index
      %c0_12 = arith.constant 0 : index
      %c0_13 = arith.constant 0 : index
      %13 = vector.load %arg4[%c0_10, %c0_11, %c0_12, %c0_13] : memref<1x3x8x1xf32, #tpu.memory_space<vmem>>, vector<1x3x8x1xf32>
      %cst = arith.constant dense<0.000000e+00> : vector<1x3x8xf32>
      %14 = vector.multi_reduction <add>, %3, %cst [3] : vector<1x3x8x128xf32> to vector<1x3x8xf32>
      %15 = vector.shape_cast %14 : vector<1x3x8xf32> to vector<1x3x8x1xf32>
      %16 = arith.addf %13, %15 : vector<1x3x8x1xf32>
      %c0_14 = arith.constant 0 : index
      %c0_15 = arith.constant 0 : index
      %c0_16 = arith.constant 0 : index
      %c0_17 = arith.constant 0 : index
      %17 = vector.load %arg4[%c0_14, %c0_15, %c0_16, %c0_17] : memref<1x3x8x1xf32, #tpu.memory_space<vmem>>, vector<1x3x8x1xf32>
      tpu.vector_store %arg4[%c0_14, %c0_15, %c0_16, %c0_17], %16 {strides = array<i32>} : memref<1x3x8x1xf32, #tpu.memory_space<vmem>>, vector<1x3x8x1xf32>,
    } else {
    }
    %c0_i32_6 = arith.constant 0 : i32
    %7 = arith.cmpi eq, %arg1, %c0_i32_6 : i32
    %8 = arith.extui %7 : i1 to i32
    %c0_i32_7 = arith.constant 0 : i32
    %9 = arith.cmpi ne, %8, %c0_i32_7 : i32
    scf.if %9 {
      %13 = tpu.iota {dimensions = array<i32: 3>} : vector<1x3x8x128xi32>
      %c32_i32 = arith.constant 32 : i32
      %14 = vector.broadcast %c32_i32 : i32 to vector<1x3x8x128xi32>
      %15 = arith.cmpi slt, %13, %14 : vector<1x3x8x128xi32>
      %cst = arith.constant 0.000000e+00 : f32
      %16 = vector.broadcast %cst : f32 to vector<1x3x8x128xf32>
      %17 = arith.select %15, %3, %16 : vector<1x3x8x128xi1>, vector<1x3x8x128xf32>
      %c0_10 = arith.constant 0 : index
      %c0_11 = arith.constant 0 : index
      %c0_12 = arith.constant 0 : index
      %c0_13 = arith.constant 0 : index
      %18 = vector.load %arg4[%c0_10, %c0_11, %c0_12, %c0_13] : memref<1x3x8x1xf32, #tpu.memory_space<vmem>>, vector<1x3x8x1xf32>
      %cst_14 = arith.constant dense<0.000000e+00> : vector<1x3x8xf32>
      %19 = vector.multi_reduction <add>, %17, %cst_14 [3] : vector<1x3x8x128xf32> to vector<1x3x8xf32>
      %20 = vector.shape_cast %19 : vector<1x3x8xf32> to vector<1x3x8x1xf32>
      %21 = arith.addf %18, %20 : vector<1x3x8x1xf32>
      %c0_15 = arith.constant 0 : index
      %c0_16 = arith.constant 0 : index
      %c0_17 = arith.constant 0 : index
      %c0_18 = arith.constant 0 : index
      %22 = vector.load %arg4[%c0_15, %c0_16, %c0_17, %c0_18] : memref<1x3x8x1xf32, #tpu.memory_space<vmem>>, vector<1x3x8x1xf32>
      tpu.vector_store %arg4[%c0_15, %c0_16, %c0_17, %c0_18], %21 {strides = array<i32>} : memref<1x3x8x1xf32, #tpu.memory_space<vmem>>, vector<1x3x8x1xf32>,
    } else {
    }
    %c0_i32_8 = arith.constant 0 : i32
    %10 = arith.cmpi eq, %arg1, %c0_i32_8 : i32
    %11 = arith.extui %10 : i1 to i32
    %c0_i32_9 = arith.constant 0 : i32
    %12 = arith.cmpi ne, %11, %c0_i32_9 : i32
    scf.if %12 {
      %c0_10 = arith.constant 0 : index
      %c0_11 = arith.constant 0 : index
      %c0_12 = arith.constant 0 : index
      %c0_13 = arith.constant 0 : index
      %13 = vector.load %arg4[%c0_10, %c0_11, %c0_12, %c0_13] : memref<1x3x8x1xf32, #tpu.memory_space<vmem>>, vector<1x3x8x1xf32>
      %14 = vector.extract_strided_slice %13 {offsets = [0, 0, 0, 0], sizes = [1, 3, 1, 1], strides = [1, 1, 1, 1]} : vector<1x3x8x1xf32> to vector<1x3x1x1xf32>
      %15 = vector.extract_strided_slice %13 {offsets = [0, 0, 1, 0], sizes = [1, 3, 1, 1], strides = [1, 1, 1, 1]} : vector<1x3x8x1xf32> to vector<1x3x1x1xf32>
      %16 = arith.addf %14, %15 : vector<1x3x1x1xf32>
      %17 = vector.extract_strided_slice %13 {offsets = [0, 0, 2, 0], sizes = [1, 3, 1, 1], strides = [1, 1, 1, 1]} : vector<1x3x8x1xf32> to vector<1x3x1x1xf32>
      %18 = arith.addf %16, %17 : vector<1x3x1x1xf32>
      %19 = vector.extract_strided_slice %13 {offsets = [0, 0, 3, 0], sizes = [1, 3, 1, 1], strides = [1, 1, 1, 1]} : vector<1x3x8x1xf32> to vector<1x3x1x1xf32>
      %20 = arith.addf %18, %19 : vector<1x3x1x1xf32>
      %21 = vector.extract_strided_slice %13 {offsets = [0, 0, 4, 0], sizes = [1, 3, 1, 1], strides = [1, 1, 1, 1]} : vector<1x3x8x1xf32> to vector<1x3x1x1xf32>
      %22 = arith.addf %20, %21 : vector<1x3x1x1xf32>
      %23 = vector.extract_strided_slice %13 {offsets = [0, 0, 5, 0], sizes = [1, 3, 1, 1], strides = [1, 1, 1, 1]} : vector<1x3x8x1xf32> to vector<1x3x1x1xf32>
      %24 = arith.addf %22, %23 : vector<1x3x1x1xf32>
      %25 = vector.extract_strided_slice %13 {offsets = [0, 0, 6, 0], sizes = [1, 3, 1, 1], strides = [1, 1, 1, 1]} : vector<1x3x8x1xf32> to vector<1x3x1x1xf32>
      %26 = arith.addf %24, %25 : vector<1x3x1x1xf32>
      %27 = vector.extract_strided_slice %13 {offsets = [0, 0, 7, 0], sizes = [1, 3, 1, 1], strides = [1, 1, 1, 1]} : vector<1x3x8x1xf32> to vector<1x3x1x1xf32>
      %28 = arith.addf %26, %27 : vector<1x3x1x1xf32>
      %cst = arith.constant 3.906250e-03 : f32
      %29 = vector.broadcast %cst : f32 to vector<1x3x1x1xf32>
      %30 = arith.mulf %28, %29 : vector<1x3x1x1xf32>
      %31 = vector.extract_strided_slice %30 {offsets = [0, 0, 0, 0], sizes = [1, 1, 1, 1], strides = [1, 1, 1, 1]} : vector<1x3x1x1xf32> to vector<1x1x1x1xf32>
      %32 = vector.shape_cast %31 : vector<1x1x1x1xf32> to vector<1x1x1xf32>
      %33 = vector.extract_strided_slice %30 {offsets = [0, 1, 0, 0], sizes = [1, 1, 1, 1], strides = [1, 1, 1, 1]} : vector<1x3x1x1xf32> to vector<1x1x1x1xf32>
      %34 = vector.shape_cast %33 : vector<1x1x1x1xf32> to vector<1x1x1xf32>
      %35 = vector.extract_strided_slice %30 {offsets = [0, 2, 0, 0], sizes = [1, 1, 1, 1], strides = [1, 1, 1, 1]} : vector<1x3x1x1xf32> to vector<1x1x1x1xf32>
      %36 = vector.shape_cast %35 : vector<1x1x1x1xf32> to vector<1x1x1xf32>
      %37 = arith.subf %32, %34 : vector<1x1x1xf32>
      %38 = arith.subf %32, %34 : vector<1x1x1xf32>
      %39 = arith.mulf %37, %38 : vector<1x1x1xf32>
      %40 = arith.subf %32, %36 : vector<1x1x1xf32>
      %41 = arith.subf %32, %36 : vector<1x1x1xf32>
      %42 = arith.mulf %40, %41 : vector<1x1x1xf32>
      %43 = arith.subf %36, %34 : vector<1x1x1xf32>
      %44 = arith.subf %36, %34 : vector<1x1x1xf32>
      %45 = arith.mulf %43, %44 : vector<1x1x1xf32>
      %46 = arith.mulf %39, %39 : vector<1x1x1xf32>
      %47 = arith.mulf %42, %42 : vector<1x1x1xf32>
      %48 = arith.addf %46, %47 : vector<1x1x1xf32>
      %49 = arith.mulf %45, %45 : vector<1x1x1xf32>
      %50 = arith.addf %48, %49 : vector<1x1x1xf32>
      %51 = math.sqrt %50 : vector<1x1x1xf32>
      %c0_14 = arith.constant 0 : index
      %c0_15 = arith.constant 0 : index
      %c0_16 = arith.constant 0 : index
      %c0_17 = arith.constant 0 : index
      %52 = vector.load %arg3[%c0_14, %c0_15, %c0_16, %c0_17] : memref<1x1x1x1xf32, #tpu.memory_space<vmem>>, vector<1x1x1x1xf32>
      %53 = vector.shape_cast %52 : vector<1x1x1x1xf32> to vector<1x1x1xf32>
      %54 = vector.shape_cast %51 : vector<1x1x1xf32> to vector<1x1x1x1xf32>
      tpu.vector_store %arg3[%c0_14, %c0_15, %c0_16, %c0_17], %54 {strides = array<i32>} : memref<1x1x1x1xf32, #tpu.memory_space<vmem>>, vector<1x1x1x1xf32>,
    } else {
    }
    return
  }
  func.func @transform_0(%arg0: i32, %arg1: i32) -> (i32, i32, i32, i32) {
    %c0_i32 = arith.constant 0 : i32
    %c0_i32_0 = arith.constant 0 : i32
    %c0_i32_1 = arith.constant 0 : i32
    return %arg0, %c0_i32, %c0_i32_0, %arg1 : i32, i32, i32, i32
  }
  func.func @transform_1(%arg0: i32, %arg1: i32) -> (i32, i32, i32, i32) {
    %c0_i32 = arith.constant 0 : i32
    %c0_i32_0 = arith.constant 0 : i32
    %c0_i32_1 = arith.constant 0 : i32
    %c0_i32_2 = arith.constant 0 : i32
    return %arg0, %c0_i32, %c0_i32_0, %c0_i32_1 : i32, i32, i32, i32
  }
}

</mosaic_0001>

<llo_original>
// kernel: l_color.1
$region0: #{l_color.1}
  #allocation0 [shape = 'u32[]', space=smem, size = 0x4, offset = 0x4, fixed_abs, tag = 'smem constant byte address 0x4 - core index']
  #allocation1 [shape = 'u32[144,128]{1,0:T(1,128)}', space=vmem, size = 0x12000, scoped, tag = 'internal scratch']
  #allocation2 [shape = 'f32[1,3,8,1]{3,2,1,0:T(8,128)}', space=vmem, size = 0x3000, scoped, tag = 'scratch operand']
  %s0 = inlined_call_operand.vmem [shape: f32[2,3,8,32], index: 0, kind: input, shape index: {}]
  %s1 = inlined_call_operand.vmem [shape: f32[2,1,1,1], index: 1, kind: output, shape index: {}]
  %s2 = sld [smem:[#allocation0]]
  $region49: #{l_color.1} parent=0
    _
  %s4 = ssub.s32 1, %s2
  %s5 = scalar_select 0, %s4, %s2
  loop: start=0, step=1, limit=4
  $region2: #{l_color.1} parent=0 // loop_pre_header
    _
  $region3: #{l_color.1} parent=0 // loop_header
    %s7 = sphi 0, %s11
    %p8 = scmp.ge.s32.totalorder %s7, 4
    %s14 = sphi 0, %s26
    %s15 = sphi 0, %s22
    %s16 = sphi 0, %s14
    %s17 = sphi 0, %s15
    %s18 = sphi 0, %s16
    %s19 = sphi 0, %s17
    %s31 = sphi 0, %s33
    %s34 = sphi 0, %s31
    %s35 = sphi 0, %s34
    %s51 = sphi 0, %s35
    %s57 = sphi 0, %s59
    %s60 = sphi 0, %s57
    %s61 = sphi 0, %s60
    %s77 = sphi 0, %s61
  $region4: #{l_color.1} parent=0 // loop_header_branch
    %10 = sbr.rel (%p8) target = $region8
  $region5: #{l_color.1} parent=0 // loop_body
    %s12 = ssub.s32 %s7, 1
    %s13 = ssub.s32 %s7, 2
    %s20 = sadd.s32 1, %s15
    %p21 = scmp.ge.s32.totalorder %s20, 1
    %s22 = scalar_select %p21, 0, %s20
    %s23 = sadd.s32 1, %s14
    %s24 = scalar_select %p21, %s23, %s14
    %p25 = scmp.ge.s32.totalorder %s24, 2
    %s26 = scalar_select %p25, 0, %s24
    %s27 = ssub.s32 %s14, %s26
    %s28 = ssub.s32 %s15, %s22
    %s29 = sor.u32 %s27, %s28
    %p30 = scmp.eq.s32.totalorder %s29, 0
    %s32 = sadd.s32 %s31, 1
    %s33 = scalar_select %p30, %s31, %s32
    %p36 = pneg %p30
    %p37 = scmp.eq.s32.totalorder %s7, 1
    %p38 = por %p36, %p37
    %p39 = scmp.ne.s32.totalorder %s31, %s34
    %p40 = scmp.eq.s32.totalorder %s7, 0
    %p41 = por %p39, %p40
    %p42 = scmp.ne.s32.totalorder %s31, %s34
    %p43 = scmp.eq.s32.totalorder %s12, 1
    %p44 = por %p42, %p43
    %p45 = scmp.ne.s32.totalorder %s34, %s35
    %p46 = scmp.eq.s32.totalorder %s12, 0
    %p47 = por %p45, %p46
    %p48 = scmp.ne.s32.totalorder %s34, %s35
    %p49 = scmp.eq.s32.totalorder %s13, 1
    %p50 = por %p48, %p49
    %p52 = scmp.ne.s32.totalorder %s35, %s51
    %p53 = scmp.eq.s32.totalorder %s13, 0
    %p54 = por %p52, %p53
    %s55 = ssub.s32 %s14, %s26
    %p56 = scmp.eq.s32.totalorder %s55, 0
    %s58 = sadd.s32 %s57, 1
    %s59 = scalar_select %p56, %s57, %s58
    %p62 = pneg %p56
    %p63 = scmp.eq.s32.totalorder %s7, 1
    %p64 = por %p62, %p63
    %p65 = scmp.ne.s32.totalorder %s57, %s60
    %p66 = scmp.eq.s32.totalorder %s7, 0
    %p67 = por %p65, %p66
    %p68 = scmp.ne.s32.totalorder %s57, %s60
    %p69 = scmp.eq.s32.totalorder %s12, 1
    %p70 = por %p68, %p69
    %p71 = scmp.ne.s32.totalorder %s60, %s61
    %p72 = scmp.eq.s32.totalorder %s12, 0
    %p73 = por %p71, %p72
    %p74 = scmp.ne.s32.totalorder %s60, %s61
    %p75 = scmp.eq.s32.totalorder %s13, 1
    %p76 = por %p74, %p75
    %p78 = scmp.ne.s32.totalorder %s61, %s77
    %p79 = scmp.eq.s32.totalorder %s13, 0
    %p80 = por %p78, %p79
    %p81 = scmp.le.s32.totalorder 1, %s7
    %p82 = scmp.lt.s32.totalorder %s7, 3
    %p83 = pnand %p81, %p82
    %p84 = pneg %p83
    // Predicated region
    $region9: #{l_color.1} parent=5 // pred_check
      _
    $region10: #{l_color.1} parent=5 // pred_check_branch
      %86 = sbr.rel (%p83) target = $region12
    $region11: #{l_color.1} parent=5 // pred_region
      %s87 = ssub.s32 %s7, 1
    $region12: #{l_color.1} parent=5 // pred_fallthru
      _
    %p88 = scmp.lt.s32.totalorder %s7, 2
    // Predicated region
    $region13: #{l_color.1} parent=5 // pred_check
      %p89 = pneg %p88
    $region14: #{l_color.1} parent=5 // pred_check_branch
      %91 = sbr.rel (%p89) target = $region16
    $region15: #{l_color.1} parent=5 // pred_region
      // Predicated region
      $region17: #{l_color.1} parent=15 // pred_check
        %p92 = pneg %p41
      $region18: #{l_color.1} parent=15 // pred_check_branch
        %94 = sbr.rel (%p92) target = $region20
      $region19: #{l_color.1} parent=15 // pred_region
        %p95 = scmp.lt.s32.totalorder %s14, 1
        %s96 = scalar_select %p95, %s14, 1
        %p97 = scmp.lt.s32.totalorder %s15, 0
        %s98 = scalar_select %p97, %s15, 0
        %s99 = smul.addr %s96, 3
        %s100 = sadd.s32 %s98, %s99
        %s101 = smul.addr %s100, 8
        %s102 = scalar_lea.vmem %s0, %s101
      $region20: #{l_color.1} parent=15 // pred_fallthru
        _
    $region16: #{l_color.1} parent=5 // pred_fallthru
      _
    %p103 = scmp.le.s32.totalorder 1, %s7
    %p104 = scmp.lt.s32.totalorder %s7, 3
    %p105 = pnand %p103, %p104
    %p106 = pneg %p105
    // Predicated region
    $region21: #{l_color.1} parent=5 // pred_check
      _
    $region22: #{l_color.1} parent=5 // pred_check_branch
      %108 = sbr.rel (%p105) target = $region24
    $region23: #{l_color.1} parent=5 // pred_region
      %s109 = ssub.s32 %s7, 1
      %p110 = scmp.lt.s32.totalorder %s16, 1
      %s111 = scalar_select %p110, %s16, 1
      %p112 = scmp.lt.s32.totalorder %s17, 0
      %s113 = scalar_select %p112, %s17, 0
      %s114 = smul.addr %s111, 3
      %s115 = sadd.s32 %s113, %s114
      %s116 = smul.addr %s115, 8
      %s117 = scalar_lea.vmem %s0, %s116
      %p118 = pneg %p47
      %p119 = pneg %p44
      %p120 = pneg %p73
      %p121 = pneg %p70
      %p122 = scmp.lt.s32.totalorder %s16, 1
      %s123 = scalar_select %p122, %s16, 1
      %s124 = scalar_lea.vmem %s1, %s123
      %p125 = scmp.lt.s32.totalorder %s16, 1
      %s126 = scalar_select %p125, %s16, 1
      %p127 = scmp.lt.s32.totalorder %s17, 0
      %s128 = scalar_select %p127, %s17, 0
      %s129 = smul.addr %s126, 3
      %s130 = sadd.s32 %s128, %s129
      %s131 = smul.addr %s130, 8
      %s132 = scalar_lea.vmem %s0, %s131
      %p133 = scmp.lt.s32.totalorder %s16, 1
      %s134 = scalar_select %p133, %s16, 1
      %s135 = scalar_lea.vmem %s1, %s134
      %p136 = scmp.eq.s32.totalorder %s17, 0
      // Predicated region
      $region25: #{l_color.1} parent=23 // pred_check
        %p137 = pneg %p136
      $region26: #{l_color.1} parent=23 // pred_check_branch
        %139 = sbr.rel (%p137) target = $region28
      $region27: #{l_color.1} parent=23 // pred_region
        %vm140 = vcmask 7168
        %141 = vst.msk [vmem:[#allocation2] sm:$0xff] %vm140, 0.0
        %142 = vst.msk [vmem:[#allocation2 + $0x8] sm:$0xff] %vm140, 0.0
        %143 = vst.msk [vmem:[#allocation2 + $0x10] sm:$0xff] %vm140, 0.0
      $region28: #{l_color.1} parent=23 // pred_fallthru
        _
      %v144 = vld [vmem:[%s132] sm:$0xff]
      %v145 = vld [vmem:[%s132 + $0x8] sm:$0xff]
      %v146 = vld [vmem:[%s132 + $0x10] sm:$0xff]
      %p147 = scmp.lt.s32.totalorder %s17, 0
      // Predicated region
      $region29: #{l_color.1} parent=23 // pred_check
        %p148 = pneg %p147
      $region30: #{l_color.1} parent=23 // pred_check_branch
        %150 = sbr.rel (%p148) target = $region32
      $region31: #{l_color.1} parent=23 // pred_region
        %v151 = vld [vmem:[#allocation2] sm:$0xff]
        %v152 = vld [vmem:[#allocation2 + $0x8] sm:$0xff]
        %v153 = vld [vmem:[#allocation2 + $0x10] sm:$0xff]
        %154 = vadd.xlane.f32.xlu0 %v144
        %v155 = vpop.xlane.xlu0 %154
        %156 = vadd.xlane.f32.xlu0 %v145
        %v157 = vpop.xlane.xlu0 %156
        %158 = vadd.xlane.f32.xlu0 %v146
        %v159 = vpop.xlane.xlu0 %158
        %v160 = vadd.f32 %v151, %v155
        %v161 = vadd.f32 %v152, %v157
        %v162 = vadd.f32 %v153, %v159
        %vm163 = vcmask 7168
        %164 = vst.msk [vmem:[#allocation2] sm:$0xff] %vm163, %v160
        %165 = vst.msk [vmem:[#allocation2 + $0x8] sm:$0xff] %vm163, %v161
        %166 = vst.msk [vmem:[#allocation2 + $0x10] sm:$0xff] %vm163, %v162
      $region32: #{l_color.1} parent=23 // pred_fallthru
        _
      // Predicated region
      $region33: #{l_color.1} parent=23 // pred_check
        %p167 = pneg %p136
      $region34: #{l_color.1} parent=23 // pred_check_branch
        %169 = sbr.rel (%p167) target = $region36
      $region35: #{l_color.1} parent=23 // pred_region
        %v170 = vlaneseq
        %v171 = vand.u32 %v170, 127
        %vm172 = vcmp.lt.s32.totalorder %v171, 32
        %v173 = vsel %vm172, %v144, 0.0
        %v174 = vsel %vm172, %v145, 0.0
        %v175 = vsel %vm172, %v146, 0.0
        %v176 = vld [vmem:[#allocation2] sm:$0xff]
        %v177 = vld [vmem:[#allocation2 + $0x8] sm:$0xff]
        %v178 = vld [vmem:[#allocation2 + $0x10] sm:$0xff]
        %179 = vadd.xlane.f32.xlu0 %v173
        %v180 = vpop.xlane.xlu0 %179
        %181 = vadd.xlane.f32.xlu0 %v174
        %v182 = vpop.xlane.xlu0 %181
        %183 = vadd.xlane.f32.xlu0 %v175
        %v184 = vpop.xlane.xlu0 %183
        %v185 = vadd.f32 %v176, %v180
        %v186 = vadd.f32 %v177, %v182
        %v187 = vadd.f32 %v178, %v184
        %vm188 = vcmask 7168
        %189 = vst.msk [vmem:[#allocation2] sm:$0xff] %vm188, %v185
        %190 = vst.msk [vmem:[#allocation2 + $0x8] sm:$0xff] %vm188, %v186
        %191 = vst.msk [vmem:[#allocation2 + $0x10] sm:$0xff] %vm188, %v187
        %v192 = vld [vmem:[#allocation2] sm:$0xff]
        %v193 = vld [vmem:[#allocation2 + $0x8] sm:$0xff]
        %v194 = vld [vmem:[#allocation2 + $0x10] sm:$0xff]
        %v198 = vrot.slane %v192, 1
        %v199 = vrot.slane %v193, 1
        %v200 = vrot.slane %v194, 1
        %v204 = vadd.f32 %v192, %v198
        %v205 = vadd.f32 %v193, %v199
        %v206 = vadd.f32 %v194, %v200
        %v207 = vrot.slane %v192, 2
        %v208 = vrot.slane %v193, 2
        %v209 = vrot.slane %v194, 2
        %v213 = vadd.f32 %v204, %v207
        %v214 = vadd.f32 %v205, %v208
        %v215 = vadd.f32 %v206, %v209
        %v216 = vrot.slane %v192, 3
        %v217 = vrot.slane %v193, 3
        %v218 = vrot.slane %v194, 3
        %v222 = vadd.f32 %v213, %v216
        %v223 = vadd.f32 %v214, %v217
        %v224 = vadd.f32 %v215, %v218
        %v225 = vrot.slane %v192, 4
        %v226 = vrot.slane %v193, 4
        %v227 = vrot.slane %v194, 4
        %v231 = vadd.f32 %v222, %v225
        %v232 = vadd.f32 %v223, %v226
        %v233 = vadd.f32 %v224, %v227
        %v234 = vrot.slane %v192, 5
        %v235 = vrot.slane %v193, 5
        %v236 = vrot.slane %v194, 5
        %v240 = vadd.f32 %v231, %v234
        %v241 = vadd.f32 %v232, %v235
        %v242 = vadd.f32 %v233, %v236
        %v243 = vrot.slane %v192, 6
        %v244 = vrot.slane %v193, 6
        %v245 = vrot.slane %v194, 6
        %v249 = vadd.f32 %v240, %v243
        %v250 = vadd.f32 %v241, %v244
        %v251 = vadd.f32 %v242, %v245
        %v252 = vrot.slane %v192, 7
        %v253 = vrot.slane %v193, 7
        %v254 = vrot.slane %v194, 7
        %v258 = vadd.f32 %v249, %v252
        %v259 = vadd.f32 %v250, %v253
        %v260 = vadd.f32 %v251, %v254
        %v261 = vmul.f32 %v258, 0.00390625
        %v262 = vmul.f32 %v259, 0.00390625
        %v263 = vmul.f32 %v260, 0.00390625
        %v264 = vsub.f32 %v261, %v262
        %v265 = vmul.f32 %v264, %v264
        %v266 = vsub.f32 %v261, %v263
        %v267 = vmul.f32 %v266, %v266
        %v268 = vsub.f32 %v263, %v262
        %v269 = vmul.f32 %v268, %v268
        %v270 = vmul.f32 %v265, %v265
        %v271 = vmul.f32 %v267, %v267
        %v272 = vadd.f32 %v270, %v271
        %v273 = vmul.f32 %v269, %v269
        %v274 = vadd.f32 %v272, %v273
        %v275 = vrsqrt.pop %v274
        %v276 = vmul.f32 %v274, %v275
        %vm277 = vcmp.eq.f32.partialorder %v274, inf
        %v278 = vsel %vm277, %v274, %v276
        %vm279 = vcmp.eq.f32.partialorder %v274, 0.0
        %v280 = vand.u32 %v274, 2147483648
        %v281 = vsel %vm279, %v280, %v278
        %vm282 = vcmask 0
        %283 = vst.msk [vmem:[%s135] sm:$0x1] %vm282, %v281
      $region36: #{l_color.1} parent=23 // pred_fallthru
        _
      %p284 = scmp.lt.s32.totalorder %s16, 1
      %s285 = scalar_select %p284, %s16, 1
      %s286 = scalar_lea.vmem %s1, %s285
      // Predicated region
      $region37: #{l_color.1} parent=23 // pred_check
        %p287 = pneg %p70
      $region38: #{l_color.1} parent=23 // pred_check_branch
        %289 = sbr.rel (%p287) target = $region40
      $region39: #{l_color.1} parent=23 // pred_region
        _
      $region40: #{l_color.1} parent=23 // pred_fallthru
        _
    $region24: #{l_color.1} parent=5 // pred_fallthru
      _
    %p290 = scmp.le.s32.totalorder 2, %s7
    // Predicated region
    $region41: #{l_color.1} parent=5 // pred_check
      %p291 = pneg %p290
    $region42: #{l_color.1} parent=5 // pred_check_branch
      %293 = sbr.rel (%p291) target = $region44
    $region43: #{l_color.1} parent=5 // pred_region
      %s294 = ssub.s32 %s7, 2
      // Predicated region
      $region45: #{l_color.1} parent=43 // pred_check
        %p295 = pneg %p76
      $region46: #{l_color.1} parent=43 // pred_check_branch
        %297 = sbr.rel (%p295) target = $region48
      $region47: #{l_color.1} parent=43 // pred_region
        %p298 = scmp.lt.s32.totalorder %s18, 1
        %s299 = scalar_select %p298, %s18, 1
        %s300 = scalar_lea.vmem %s1, %s299
      $region48: #{l_color.1} parent=43 // pred_fallthru
        _
    $region44: #{l_color.1} parent=5 // pred_fallthru
      _
  $region6: #{l_color.1} parent=0 // loop_footer
    %s11 = sadd.s32 1, %s7
  $region7: #{l_color.1} parent=0 // loop_footer_branch
    %6 = sbr.rel target = $region3
  $region8: #{l_color.1} parent=0 // loop_exit
    _

</llo_original>
